<compile_context>
chip_gen: v7x
topology: tpu7x:2x2x1
jax: 0.10.0
libtpu: 0.0.40
codegen_flags: <defaults>
</compile_context>

<pallas_src>
import math

import jax
import jax.numpy as jnp
from jax import lax
from jax.experimental import pallas as pl
from jax.experimental.pallas import tpu as pltpu

_MIB = 1024 * 1024
_INV_SQRT2 = 1.0 / math.sqrt(2.0)


def _round_up(a: int, b: int) -> int:
    return (a + b - 1) // b * b


def _cdiv(a: int, b: int) -> int:
    return (a + b - 1) // b


def _vmem_capacity_bytes() -> int:
    try:
        return int(pltpu.get_tpu_info().vmem_capacity_bytes)
    except Exception:
        return 64 * _MIB  # v7x lower bound (safe fallback)


def _elementwise_dtype(x_dtype):
    """bf16 elementwise on chips with a bf16 VPU (v6e/v7x); f32 otherwise."""
    if jnp.dtype(x_dtype) != jnp.dtype(jnp.bfloat16):
        return jnp.float32
    try:
        kind = jax.devices()[0].device_kind.lower()
    except Exception:
        kind = ""
    if ("v6" in kind) or ("v7" in kind) or ("tpu7" in kind):
        return jnp.bfloat16
    return jnp.float32  # v5e and older: no packed-bf16 VALU


def _gelu_exact(h_f32, compute_dtype):
    # Exact-erf GELU (matches torch.nn.GELU() default).  erf is evaluated in
    # f32; the gate multiply runs packed-bf16 on v6e/v7x for bf16 inputs.
    gate = 0.5 * (1.0 + lax.erf(h_f32 * _INV_SQRT2))
    if jnp.dtype(compute_dtype) == jnp.dtype(jnp.float32):
        return h_f32 * gate
    return h_f32.astype(compute_dtype) * gate.astype(compute_dtype)


def _make_resident_kernel(compute_dtype):
    # Grid: (token tiles [parallel],).  Weights resident in VMEM for the call.
    def kernel(x_ref, w1_ref, b1_ref, w2_ref, b2_ref, o_ref):
        h = jnp.dot(x_ref[...], w1_ref[...], preferred_element_type=jnp.float32)
        h = _gelu_exact(h + b1_ref[...].astype(jnp.float32), compute_dtype)
        y = jnp.dot(h.astype(w2_ref.dtype), w2_ref[...],
                    preferred_element_type=jnp.float32)
        o_ref[...] = (y + b2_ref[...].astype(jnp.float32)).astype(o_ref.dtype)
    return kernel


def _make_streaming_kernel(compute_dtype, use_scratch):
    # Grid: (token tiles [parallel], hidden chunks [arbitrary / reduction]).
    def kernel(x_ref, w1_ref, b1_ref, w2_ref, b2_ref, o_ref, *scratch):
        k = pl.program_id(1)
        h = jnp.dot(x_ref[...], w1_ref[...], preferred_element_type=jnp.float32)
        h = _gelu_exact(h + b1_ref[...].astype(jnp.float32), compute_dtype)
        part = jnp.dot(h.astype(w2_ref.dtype), w2_ref[...],
                       preferred_element_type=jnp.float32)

        if use_scratch:
            acc_ref = scratch[0]

            @pl.when(k == 0)
            def _init():
                acc_ref[...] = jnp.zeros_like(acc_ref)

            acc_ref[...] += part

            @pl.when(k == pl.num_programs(1) - 1)
            def _finalize():
                o_ref[...] = (acc_ref[...] + b2_ref[...].astype(jnp.float32)
                              ).astype(o_ref.dtype)
        else:
            # f32 output: the output block is resident across the k axis, so
            # accumulate into it directly (saves tm*d_out*4 bytes of scratch
            # and the final full-tile copy).  b2 is added exactly once.
            @pl.when(k == 0)
            def _first():
                o_ref[...] = part + b2_ref[...].astype(jnp.float32)

            @pl.when(k != 0)
            def _rest():
                o_ref[...] += part
    return kernel


def mlp_pallas(x, w1, b1, w2, b2, *, tm=None, th=None):
    """y = fc2(GELU(fc1(x))).  x: (..., d_in) -> (..., d_out).

    Weights stored [fan_in, fan_out] (transposed vs torch nn.Linear.weight).
    tm / th: optional overrides for the token-row tile and hidden-dim chunk;
    by default both are derived from the chip's VMEM capacity, preferring
    full weight residency (th == hidden).

    Precision note: bf16 operands feed the MXU natively with f32 accumulation;
    f32 operands run the MXU in multi-pass emulation (~3x slower) — cast to
    bf16 outside the kernel if the precision policy allows.
    """
    *lead, d_in = x.shape
    hidden, d_out = w1.shape[1], w2.shape[1]
    assert w1.shape[0] == d_in and w2.shape[0] == hidden
    if b1.ndim == 1:
        b1 = b1.reshape(1, -1)
    if b2.ndim == 1:
        b2 = b2.reshape(1, -1)

    x2 = x.reshape(-1, d_in)
    m = x2.shape[0]
    out_dtype = x.dtype

    isz_x = jnp.dtype(x.dtype).itemsize
    isz_o = jnp.dtype(out_dtype).itemsize
    isz_w1 = jnp.dtype(w1.dtype).itemsize
    isz_b1 = jnp.dtype(b1.dtype).itemsize
    isz_w2 = jnp.dtype(w2.dtype).itemsize
    isz_b2 = jnp.dtype(b2.dtype).itemsize

    # Sublane packing for the token (second-minor) axis: 8 f32, 16 bf16, 32 i8.
    sublane = {4: 8, 2: 16, 1: 32}.get(isz_x, 8)

    # ---- generation-aware VMEM budget (tiles are *derived* from it) --------
    cap = _vmem_capacity_bytes()
    budget = cap - max(16 * _MIB, cap // 4)  # ~48 MiB on v7x, ~96 MiB on v5e/v6e

    def est_bytes(tm_, th_):
        b = 2 * tm_ * d_in * isz_x                        # x tile (dbl-buffered)
        b += 2 * tm_ * d_out * isz_o                      # out tile (dbl-buffered)
        b += 2 * (d_in * th_ * isz_w1 + th_ * isz_b1)     # fc1 weights / bias
        b += 2 * (th_ * d_out * isz_w2 + d_out * isz_b2)  # fc2 weights / bias
        b += tm_ * th_ * (8 + isz_w2)                     # f32 h + gate + cast
        if th_ < hidden and jnp.dtype(out_dtype) != jnp.dtype(jnp.float32):
            b += tm_ * d_out * 4                          # f32 scratch accumulator
        return b

    # ---- token-tile candidates: keep >= 2 parallel blocks when possible so
    #      both v7x TensorCores get work; round to the sublane packing --------
    m_aligned = _round_up(max(m, 1), sublane)
    if m_aligned >= 2 * sublane:
        tm_cap = _round_up(_cdiv(m_aligned, 2), sublane)
    else:
        tm_cap = m_aligned
    tm_requests = [tm] if tm is not None else [1024, 512, 256, 128]
    tm_cands = []
    for t in tm_requests:
        t = max(sublane, min(_round_up(int(t), sublane), tm_cap))
        if t not in tm_cands:
            tm_cands.append(t)

    # ---- hidden-dim candidates: residency first, then lane-aligned chunks ---
    if th is not None:
        if hidden % th == 0 and (th % 128 == 0 or th == hidden):
            th_cands = [int(th)]
        else:
            th_cands = [hidden]
    else:
        th_cands = [hidden] + [c for c in (4096, 2048, 1024, 512, 256, 128)
                               if c < hidden and hidden % c == 0]

    chosen = None
    if th_cands[0] == hidden:
        # Prefer full weight residency: weights are DMA'd from HBM once per call.
        for t in tm_cands:
            if est_bytes(t, hidden) <= budget:
                chosen = (t, hidden)
                break
    if chosen is None:
        stream_ths = [c for c in th_cands if c != hidden] or th_cands
        # Streaming: maximize tm first (weight HBM traffic ~ (M/tm) * W bytes),
        # then the largest hidden chunk that still fits.
        for t in tm_cands:
            for c in stream_ths:
                if est_bytes(t, c) <= budget:
                    chosen = (t, c)
                    break
            if chosen is not None:
                break
    if chosen is None:
        # Nothing fits the soft budget; fall back to the smallest footprint.
        chosen = (tm_cands[-1], th_cands[-1])
    tm_eff, th_eff = chosen

    # Rebalance tm to cut tail padding (same block count, less wasted work).
    nm = _cdiv(m_aligned, tm_eff)
    tm_eff = max(sublane, _round_up(_cdiv(m_aligned, nm), sublane))
    m_pad = _round_up(m, tm_eff)
    nm = m_pad // tm_eff
    if m_pad != m:
        x2 = jnp.pad(x2, ((0, m_pad - m), (0, 0)))

    compute_dtype = _elementwise_dtype(x.dtype)

    est = est_bytes(tm_eff, th_eff)
    vmem_limit = int(min(max(est + 8 * _MIB, 32 * _MIB),
                         max(cap - 4 * _MIB, 32 * _MIB)))

    if th_eff == hidden:
        grid = (nm,)
        in_specs = [
            pl.BlockSpec((tm_eff, d_in), lambda i: (i, 0)),
            pl.BlockSpec((d_in, hidden), lambda i: (0, 0)),   # resident
            pl.BlockSpec((1, hidden), lambda i: (0, 0)),      # resident
            pl.BlockSpec((hidden, d_out), lambda i: (0, 0)),  # resident
            pl.BlockSpec((1, d_out), lambda i: (0, 0)),       # resident
        ]
        out_specs = pl.BlockSpec((tm_eff, d_out), lambda i: (i, 0))
        scratch_shapes = []
        dim_sem = ("parallel",)
        kernel = _make_resident_kernel(compute_dtype)
    else:
        nk = hidden // th_eff
        use_scratch = jnp.dtype(out_dtype) != jnp.dtype(jnp.float32)
        grid = (nm, nk)
        in_specs = [
            pl.BlockSpec((tm_eff, d_in), lambda i, k: (i, 0)),
            pl.BlockSpec((d_in, th_eff), lambda i, k: (0, k)),
            pl.BlockSpec((1, th_eff), lambda i, k: (0, k)),
            pl.BlockSpec((th_eff, d_out), lambda i, k: (k, 0)),
            pl.BlockSpec((1, d_out), lambda i, k: (0, 0)),
        ]
        out_specs = pl.BlockSpec((tm_eff, d_out), lambda i, k: (i, 0))
        scratch_shapes = ([pltpu.VMEM((tm_eff, d_out), jnp.float32)]
                          if use_scratch else [])
        dim_sem = ("parallel", "arbitrary")
        kernel = _make_streaming_kernel(compute_dtype, use_scratch)

    out2 = pl.pallas_call(
        kernel,
        out_shape=jax.ShapeDtypeStruct((m_pad, d_out), out_dtype),
        grid_spec=pltpu.PrefetchScalarGridSpec(
            num_scalar_prefetch=0,
            grid=grid,
            in_specs=in_specs,
            out_specs=out_specs,
            scratch_shapes=scratch_shapes,
        ),
        compiler_params=pltpu.CompilerParams(
            dimension_semantics=dim_sem,
            vmem_limit_bytes=vmem_limit,
        ),
    )(x2, w1, b1, w2, b2)

    if m_pad != m:
        out2 = out2[:m]
    return out2.reshape(*lead, d_out)


def init_mlp_params(key, in_features, hidden_features, out_features,
                    dtype=jnp.float32):
    """nn.Linear-style init (uniform +/- 1/sqrt(fan_in)); weights [fan_in, fan_out]."""
    k1, k2, k3, k4 = jax.random.split(key, 4)
    l1 = 1.0 / math.sqrt(in_features)
    l2 = 1.0 / math.sqrt(hidden_features)
    w1 = jax.random.uniform(k1, (in_features, hidden_features), dtype, -l1, l1)
    b1 = jax.random.uniform(k2, (1, hidden_features), dtype, -l1, l1)
    w2 = jax.random.uniform(k3, (hidden_features, out_features), dtype, -l2, l2)
    b2 = jax.random.uniform(k4, (1, out_features), dtype, -l2, l2)
    return w1, b1, w2, b2


def _reference(x, w1, b1, w2, b2):
    xf = x.reshape(-1, x.shape[-1]).astype(jnp.float32)
    h = jnp.dot(xf, w1.astype(jnp.float32),
                precision=lax.Precision.HIGHEST) + b1.astype(jnp.float32)
    h = 0.5 * h * (1.0 + lax.erf(h / math.sqrt(2.0)))
    y = jnp.dot(h, w2.astype(jnp.float32),
                precision=lax.Precision.HIGHEST) + b2.astype(jnp.float32)
    return y.reshape(*x.shape[:-1], w2.shape[1])


if __name__ == "__main__":
    key = jax.random.PRNGKey(0)
    k0, k1, k2, k3, k4 = jax.random.split(key, 5)

    # ---- test 1: f32, small ViT-style shapes (resident-weight path) --------
    B, N, C, H = 2, 8, 32, 64
    x = jax.random.normal(k0, (B, N, C), jnp.float32)
    w1, b1, w2, b2 = init_mlp_params(k1, C, H, C, jnp.float32)
    y = jax.block_until_ready(mlp_pallas(x, w1, b1, w2, b2))
    assert y.shape == (B, N, C)
    assert jnp.allclose(y, _reference(x, w1, b1, w2, b2), atol=1e-5, rtol=1e-5)

    # ---- test 2: ragged token count + forced hidden-dim streaming (f32:
    #      accumulates directly into the resident output block) --------------
    B2, N2, C2, H2 = 2, 5, 32, 256
    x_r = jax.random.normal(k2, (B2, N2, C2), jnp.float32)
    p_r = init_mlp_params(k3, C2, H2, C2, jnp.float32)
    y_r = jax.block_until_ready(mlp_pallas(x_r, *p_r, tm=8, th=128))
    assert y_r.shape == (B2, N2, C2)
    assert jnp.allclose(y_r, _reference(x_r, *p_r), atol=1e-5, rtol=1e-5)

    # ---- test 3: bf16 operands fed straight to the MXU (resident path) -----
    xb = x.astype(jnp.bfloat16)
    pb = tuple(p.astype(jnp.bfloat16) for p in (w1, b1, w2, b2))
    yb = jax.block_until_ready(mlp_pallas(xb, *pb))
    assert yb.dtype == jnp.bfloat16
    assert jnp.allclose(yb.astype(jnp.float32), _reference(xb, *pb),
                        atol=5e-2, rtol=5e-2)

    # ---- test 4: bf16 + forced streaming (f32 scratch accumulator path) ----
    x_s = jax.random.normal(k4, (B2, N, C2), jnp.bfloat16)
    p_s = tuple(p.astype(jnp.bfloat16)
                for p in init_mlp_params(k3, C2, H2, C2, jnp.float32))
    y_s = jax.block_until_ready(mlp_pallas(x_s, *p_s, th=128))
    assert y_s.dtype == jnp.bfloat16 and y_s.shape == (B2, N, C2)
    assert jnp.allclose(y_s.astype(jnp.float32), _reference(x_s, *p_s),
                        atol=5e-2, rtol=5e-2)

    print("KERNEL_OK")
</pallas_src>

<mosaic_0001>
module attributes {stable_mosaic.version = 11 : i64} {
  func.func @kernel(%arg0: i32, %arg1: memref<8x32xf32, #tpu.memory_space<vmem>>, %arg2: memref<32x64xf32, #tpu.memory_space<vmem>>, %arg3: memref<1x64xf32, #tpu.memory_space<vmem>>, %arg4: memref<64x32xf32, #tpu.memory_space<vmem>>, %arg5: memref<1x32xf32, #tpu.memory_space<vmem>>, %arg6: memref<8x32xf32, #tpu.memory_space<vmem>>) attributes {dimension_semantics = [#tpu.dimension_semantics<parallel>], iteration_bounds = array<i64: 2>, scalar_prefetch = 0 : i64, scratch_operands = 0 : i64, tpu.core_type = #tpu.core_type<tc>, window_params = [{transform_indices = @transform_0, window_bounds = array<i64: 8, 32>}, {pipeline_mode = #tpu.pipeline_mode<synchronous>, transform_indices = @transform_1, window_bounds = array<i64: 32, 64>}, {pipeline_mode = #tpu.pipeline_mode<synchronous>, transform_indices = @transform_2, window_bounds = array<i64: 1, 64>}, {pipeline_mode = #tpu.pipeline_mode<synchronous>, transform_indices = @transform_3, window_bounds = array<i64: 64, 32>}, {pipeline_mode = #tpu.pipeline_mode<synchronous>, transform_indices = @transform_4, window_bounds = array<i64: 1, 32>}, {transform_indices = @transform_5, window_bounds = array<i64: 8, 32>}]} {
    %c0 = arith.constant 0 : index
    %c0_0 = arith.constant 0 : index
    %0 = vector.load %arg1[%c0, %c0_0] : memref<8x32xf32, #tpu.memory_space<vmem>>, vector<8x32xf32>
    %c0_1 = arith.constant 0 : index
    %c0_2 = arith.constant 0 : index
    %1 = vector.load %arg2[%c0_1, %c0_2] : memref<32x64xf32, #tpu.memory_space<vmem>>, vector<32x64xf32>
    %cst = arith.constant dense<0.000000e+00> : vector<8x64xf32>
    %2 = tpu.matmul %0, %1, %cst {dimension_numbers = #tpu.dot_dimension_numbers<[1], [0], [0], [1], [0, 0, 1, 1], [], []>} : vector<8x32xf32>, vector<32x64xf32>, vector<8x64xf32> -> vector<8x64xf32>
    %c0_3 = arith.constant 0 : index
    %c0_4 = arith.constant 0 : index
    %3 = vector.load %arg3[%c0_3, %c0_4] : memref<1x64xf32, #tpu.memory_space<vmem>>, vector<1x64xf32>
    %4 = vector.broadcast %3 : vector<1x64xf32> to vector<8x64xf32>
    %5 = arith.addf %2, %4 : vector<8x64xf32>
    %cst_5 = arith.constant 0.707106769 : f32
    %6 = vector.broadcast %cst_5 : f32 to vector<8x64xf32>
    %7 = arith.mulf %5, %6 : vector<8x64xf32>
    %8 = math.erf %7 : vector<8x64xf32>
    %cst_6 = arith.constant 1.000000e+00 : f32
    %9 = vector.broadcast %cst_6 : f32 to vector<8x64xf32>
    %10 = arith.addf %9, %8 : vector<8x64xf32>
    %cst_7 = arith.constant 5.000000e-01 : f32
    %11 = vector.broadcast %cst_7 : f32 to vector<8x64xf32>
    %12 = arith.mulf %11, %10 : vector<8x64xf32>
    %13 = arith.mulf %5, %12 : vector<8x64xf32>
    %c0_8 = arith.constant 0 : index
    %c0_9 = arith.constant 0 : index
    %14 = vector.load %arg4[%c0_8, %c0_9] : memref<64x32xf32, #tpu.memory_space<vmem>>, vector<64x32xf32>
    %cst_10 = arith.constant dense<0.000000e+00> : vector<8x32xf32>
    %15 = tpu.matmul %13, %14, %cst_10 {dimension_numbers = #tpu.dot_dimension_numbers<[1], [0], [0], [1], [0, 0, 1, 1], [], []>} : vector<8x64xf32>, vector<64x32xf32>, vector<8x32xf32> -> vector<8x32xf32>
    %c0_11 = arith.constant 0 : index
    %c0_12 = arith.constant 0 : index
    %16 = vector.load %arg5[%c0_11, %c0_12] : memref<1x32xf32, #tpu.memory_space<vmem>>, vector<1x32xf32>
    %17 = vector.broadcast %16 : vector<1x32xf32> to vector<8x32xf32>
    %18 = arith.addf %15, %17 : vector<8x32xf32>
    %c0_13 = arith.constant 0 : index
    %c0_14 = arith.constant 0 : index
    %19 = vector.load %arg6[%c0_13, %c0_14] : memref<8x32xf32, #tpu.memory_space<vmem>>, vector<8x32xf32>
    tpu.vector_store %arg6[%c0_13, %c0_14], %18 {strides = array<i32>} : memref<8x32xf32, #tpu.memory_space<vmem>>, vector<8x32xf32>,
    return
  }
  func.func @transform_0(%arg0: i32) -> (i32, i32) {
    %c0_i32 = arith.constant 0 : i32
    %c0_i32_0 = arith.constant 0 : i32
    return %arg0, %c0_i32 : i32, i32
  }
  func.func @transform_1(%arg0: i32) -> (i32, i32) {
    %c0_i32 = arith.constant 0 : i32
    %c0_i32_0 = arith.constant 0 : i32
    %c0_i32_1 = arith.constant 0 : i32
    return %c0_i32, %c0_i32_0 : i32, i32
  }
  func.func @transform_2(%arg0: i32) -> (i32, i32) {
    %c0_i32 = arith.constant 0 : i32
    %c0_i32_0 = arith.constant 0 : i32
    %c0_i32_1 = arith.constant 0 : i32
    return %c0_i32, %c0_i32_0 : i32, i32
  }
  func.func @transform_3(%arg0: i32) -> (i32, i32) {
    %c0_i32 = arith.constant 0 : i32
    %c0_i32_0 = arith.constant 0 : i32
    %c0_i32_1 = arith.constant 0 : i32
    return %c0_i32, %c0_i32_0 : i32, i32
  }
  func.func @transform_4(%arg0: i32) -> (i32, i32) {
    %c0_i32 = arith.constant 0 : i32
    %c0_i32_0 = arith.constant 0 : i32
    %c0_i32_1 = arith.constant 0 : i32
    return %c0_i32, %c0_i32_0 : i32, i32
  }
  func.func @transform_5(%arg0: i32) -> (i32, i32) {
    %c0_i32 = arith.constant 0 : i32
    %c0_i32_0 = arith.constant 0 : i32
    return %arg0, %c0_i32 : i32, i32
  }
}

</mosaic_0001>

<llo_original>
// kernel: tpu_custom_call.1
$region0: #{tpu_custom_call.1}
  #allocation0 [shape = 'u32[]', space=smem, size = 0x4, offset = 0x4, fixed_abs, tag = 'smem constant byte address 0x4 - core index']
  #allocation1 [shape = 'u32[144,128]{1,0:T(1,128)}', space=vmem, size = 0x12000, scoped, tag = 'internal scratch']
  %s0 = inlined_call_operand.vmem [shape: f32[16,32], index: 0, kind: input, shape index: {}]
  %s1 = inlined_call_operand.vmem [shape: f32[32,64], index: 1, kind: input, shape index: {}]
  %s2 = inlined_call_operand.vmem [shape: f32[1,64], index: 2, kind: input, shape index: {}]
  %s3 = inlined_call_operand.vmem [shape: f32[64,32], index: 3, kind: input, shape index: {}]
  %s4 = inlined_call_operand.vmem [shape: f32[1,32], index: 4, kind: input, shape index: {}]
  %s5 = inlined_call_operand.hbm [shape: f32[16,32], index: 5, kind: output, shape index: {}]
  %s6 = sld [smem:[#allocation0]]
  $region53: #{tpu_custom_call.1} parent=0
    _
  %s8 = ssub.s32 1, %s6
  %s9 = scalar_select 0, %s8, %s6
  $region1: #{tpu_custom_call.1} parent=0
    #allocation2 [shape = 'u8[8192]{0}', space=vmem, size = 0x2000, scoped, tag = 'output window, operand 0']
    #allocation3 [shape = 's32[2]{0}', space=sflag, size = 0x8, scoped, tag = 'scoped memory for tpu_custom_call.1']
    %10 = vsyncpa [#allocation3], 0
    %s11 = scalar_lea.sflag [#allocation3], 1
    %12 = vsyncpa %s11, 0
    loop: start=0, step=1, limit=4
    $region2: #{tpu_custom_call.1} parent=1 // loop_pre_header
      _
    $region3: #{tpu_custom_call.1} parent=1 // loop_header
      %s14 = sphi 0, %s18
      %p15 = scmp.ge.s32.totalorder %s14, 4
      %s24 = sphi 0, %s26
      %s27 = sphi 0, %s24
      %s28 = sphi 0, %s27
      %s44 = sphi 0, %s28
      %s48 = sphi 0, %s48
      %s50 = sphi 0, %s48
      %s51 = sphi 0, %s50
      %s65 = sphi 0, %s51
      %s69 = sphi 0, %s69
      %s71 = sphi 0, %s69
      %s72 = sphi 0, %s71
      %s86 = sphi 0, %s72
      %s90 = sphi 0, %s90
      %s92 = sphi 0, %s90
      %s93 = sphi 0, %s92
      %s107 = sphi 0, %s93
      %s111 = sphi 0, %s111
      %s113 = sphi 0, %s111
      %s114 = sphi 0, %s113
      %s128 = sphi 0, %s114
      %s134 = sphi 0, %s136
      %s137 = sphi 0, %s134
      %s138 = sphi 0, %s137
      %s154 = sphi 0, %s138
    $region4: #{tpu_custom_call.1} parent=1 // loop_header_branch
      %17 = sbr.rel (%p15) target = $region8
    $region5: #{tpu_custom_call.1} parent=1 // loop_body
      %s19 = ssub.s32 %s14, 1
      %s20 = ssub.s32 %s14, 2
      %s21 = sadd.s32 %s14, 1
      %s22 = ssub.s32 %s14, %s21
      %p23 = scmp.eq.s32.totalorder %s22, 0
      %s25 = sadd.s32 %s24, 1
      %s26 = scalar_select %p23, %s24, %s25
      %p29 = pneg %p23
      %p30 = scmp.eq.s32.totalorder %s14, 1
      %p31 = por %p29, %p30
      %p32 = scmp.ne.s32.totalorder %s24, %s27
      %p33 = scmp.eq.s32.totalorder %s14, 0
      %p34 = por %p32, %p33
      %p35 = scmp.ne.s32.totalorder %s24, %s27
      %p36 = scmp.eq.s32.totalorder %s19, 1
      %p37 = por %p35, %p36
      %p38 = scmp.ne.s32.totalorder %s27, %s28
      %p39 = scmp.eq.s32.totalorder %s19, 0
      %p40 = por %p38, %p39
      %p41 = scmp.ne.s32.totalorder %s27, %s28
      %p42 = scmp.eq.s32.totalorder %s20, 1
      %p43 = por %p41, %p42
      %p45 = scmp.ne.s32.totalorder %s28, %s44
      %p46 = scmp.eq.s32.totalorder %s20, 0
      %p47 = por %p45, %p46
      %s49 = sadd.s32 %s48, 1
      %p52 = scmp.eq.s32.totalorder %s14, 1
      %p53 = scmp.ne.s32.totalorder %s48, %s50
      %p54 = scmp.eq.s32.totalorder %s14, 0
      %p55 = por %p53, %p54
      %p56 = scmp.ne.s32.totalorder %s48, %s50
      %p57 = scmp.eq.s32.totalorder %s19, 1
      %p58 = por %p56, %p57
      %p59 = scmp.ne.s32.totalorder %s50, %s51
      %p60 = scmp.eq.s32.totalorder %s19, 0
      %p61 = por %p59, %p60
      %p62 = scmp.ne.s32.totalorder %s50, %s51
      %p63 = scmp.eq.s32.totalorder %s20, 1
      %p64 = por %p62, %p63
      %p66 = scmp.ne.s32.totalorder %s51, %s65
      %p67 = scmp.eq.s32.totalorder %s20, 0
      %p68 = por %p66, %p67
      %s70 = sadd.s32 %s69, 1
      %p73 = scmp.eq.s32.totalorder %s14, 1
      %p74 = scmp.ne.s32.totalorder %s69, %s71
      %p75 = scmp.eq.s32.totalorder %s14, 0
      %p76 = por %p74, %p75
      %p77 = scmp.ne.s32.totalorder %s69, %s71
      %p78 = scmp.eq.s32.totalorder %s19, 1
      %p79 = por %p77, %p78
      %p80 = scmp.ne.s32.totalorder %s71, %s72
      %p81 = scmp.eq.s32.totalorder %s19, 0
      %p82 = por %p80, %p81
      %p83 = scmp.ne.s32.totalorder %s71, %s72
      %p84 = scmp.eq.s32.totalorder %s20, 1
      %p85 = por %p83, %p84
      %p87 = scmp.ne.s32.totalorder %s72, %s86
      %p88 = scmp.eq.s32.totalorder %s20, 0
      %p89 = por %p87, %p88
      %s91 = sadd.s32 %s90, 1
      %p94 = scmp.eq.s32.totalorder %s14, 1
      %p95 = scmp.ne.s32.totalorder %s90, %s92
      %p96 = scmp.eq.s32.totalorder %s14, 0
      %p97 = por %p95, %p96
      %p98 = scmp.ne.s32.totalorder %s90, %s92
      %p99 = scmp.eq.s32.totalorder %s19, 1
      %p100 = por %p98, %p99
      %p101 = scmp.ne.s32.totalorder %s92, %s93
      %p102 = scmp.eq.s32.totalorder %s19, 0
      %p103 = por %p101, %p102
      %p104 = scmp.ne.s32.totalorder %s92, %s93
      %p105 = scmp.eq.s32.totalorder %s20, 1
      %p106 = por %p104, %p105
      %p108 = scmp.ne.s32.totalorder %s93, %s107
      %p109 = scmp.eq.s32.totalorder %s20, 0
      %p110 = por %p108, %p109
      %s112 = sadd.s32 %s111, 1
      %p115 = scmp.eq.s32.totalorder %s14, 1
      %p116 = scmp.ne.s32.totalorder %s111, %s113
      %p117 = scmp.eq.s32.totalorder %s14, 0
      %p118 = por %p116, %p117
      %p119 = scmp.ne.s32.totalorder %s111, %s113
      %p120 = scmp.eq.s32.totalorder %s19, 1
      %p121 = por %p119, %p120
      %p122 = scmp.ne.s32.totalorder %s113, %s114
      %p123 = scmp.eq.s32.totalorder %s19, 0
      %p124 = por %p122, %p123
      %p125 = scmp.ne.s32.totalorder %s113, %s114
      %p126 = scmp.eq.s32.totalorder %s20, 1
      %p127 = por %p125, %p126
      %p129 = scmp.ne.s32.totalorder %s114, %s128
      %p130 = scmp.eq.s32.totalorder %s20, 0
      %p131 = por %p129, %p130
      %s132 = ssub.s32 %s14, %s21
      %p133 = scmp.eq.s32.totalorder %s132, 0
      %s135 = sadd.s32 %s134, 1
      %s136 = scalar_select %p133, %s134, %s135
      %p139 = pneg %p133
      %p140 = scmp.eq.s32.totalorder %s14, 1
      %p141 = por %p139, %p140
      %p142 = scmp.ne.s32.totalorder %s134, %s137
      %p143 = scmp.eq.s32.totalorder %s14, 0
      %p144 = por %p142, %p143
      %p145 = scmp.ne.s32.totalorder %s134, %s137
      %p146 = scmp.eq.s32.totalorder %s19, 1
      %p147 = por %p145, %p146
      %p148 = scmp.ne.s32.totalorder %s137, %s138
      %p149 = scmp.eq.s32.totalorder %s19, 0
      %p150 = por %p148, %p149
      %p151 = scmp.ne.s32.totalorder %s137, %s138
      %p152 = scmp.eq.s32.totalorder %s20, 1
      %p153 = por %p151, %p152
      %p155 = scmp.ne.s32.totalorder %s138, %s154
      %p156 = scmp.eq.s32.totalorder %s20, 0
      %p157 = por %p155, %p156
      %p158 = scmp.le.s32.totalorder 1, %s14
      %p159 = scmp.lt.s32.totalorder %s14, 3
      %p160 = pnand %p158, %p159
      %p161 = pneg %p160
      // Predicated region
      $region9: #{tpu_custom_call.1} parent=5 // pred_check
        _
      $region10: #{tpu_custom_call.1} parent=5 // pred_check_branch
        %163 = sbr.rel (%p160) target = $region12
      $region11: #{tpu_custom_call.1} parent=5 // pred_region
        %s164 = ssub.s32 %s14, 1
        // Predicated region
        $region13: #{tpu_custom_call.1} parent=11 // pred_check
          %p165 = pneg %p61
        $region14: #{tpu_custom_call.1} parent=11 // pred_check_branch
          %167 = sbr.rel (%p165) target = $region16
        $region15: #{tpu_custom_call.1} parent=11 // pred_region
          _
        $region16: #{tpu_custom_call.1} parent=11 // pred_fallthru
          _
        // Predicated region
        $region17: #{tpu_custom_call.1} parent=11 // pred_check
          %p168 = pneg %p82
        $region18: #{tpu_custom_call.1} parent=11 // pred_check_branch
          %170 = sbr.rel (%p168) target = $region20
        $region19: #{tpu_custom_call.1} parent=11 // pred_region
          _
        $region20: #{tpu_custom_call.1} parent=11 // pred_fallthru
          _
        // Predicated region
        $region21: #{tpu_custom_call.1} parent=11 // pred_check
          %p171 = pneg %p103
        $region22: #{tpu_custom_call.1} parent=11 // pred_check_branch
          %173 = sbr.rel (%p171) target = $region24
        $region23: #{tpu_custom_call.1} parent=11 // pred_region
          _
        $region24: #{tpu_custom_call.1} parent=11 // pred_fallthru
          _
        // Predicated region
        $region25: #{tpu_custom_call.1} parent=11 // pred_check
          %p174 = pneg %p124
        $region26: #{tpu_custom_call.1} parent=11 // pred_check_branch
          %176 = sbr.rel (%p174) target = $region28
        $region27: #{tpu_custom_call.1} parent=11 // pred_region
          _
        $region28: #{tpu_custom_call.1} parent=11 // pred_fallthru
          _
      $region12: #{tpu_custom_call.1} parent=5 // pred_fallthru
        _
      %p177 = scmp.lt.s32.totalorder %s14, 2
      // Predicated region
      $region29: #{tpu_custom_call.1} parent=5 // pred_check
        %p178 = pneg %p177
      $region30: #{tpu_custom_call.1} parent=5 // pred_check_branch
        %180 = sbr.rel (%p178) target = $region32
      $region31: #{tpu_custom_call.1} parent=5 // pred_region
        // Predicated region
        $region33: #{tpu_custom_call.1} parent=31 // pred_check
          %p181 = pneg %p34
        $region34: #{tpu_custom_call.1} parent=31 // pred_check_branch
          %183 = sbr.rel (%p181) target = $region36
        $region35: #{tpu_custom_call.1} parent=31 // pred_region
          %p184 = scmp.lt.s32.totalorder %s14, 1
          %s185 = scalar_select %p184, %s14, 1
          %s186 = smul.addr %s185, 8
          %s187 = scalar_lea.vmem %s0, %s186
        $region36: #{tpu_custom_call.1} parent=31 // pred_fallthru
          _
      $region32: #{tpu_custom_call.1} parent=5 // pred_fallthru
        _
      %p188 = scmp.le.s32.totalorder 1, %s14
      %p189 = scmp.lt.s32.totalorder %s14, 3
      %p190 = pnand %p188, %p189
      %p191 = pneg %p190
      // Predicated region
      $region37: #{tpu_custom_call.1} parent=5 // pred_check
        _
      $region38: #{tpu_custom_call.1} parent=5 // pred_check_branch
        %193 = sbr.rel (%p190) target = $region40
      $region39: #{tpu_custom_call.1} parent=5 // pred_region
        %s194 = ssub.s32 %s14, 1
        %p195 = scmp.lt.s32.totalorder %s19, 1
        %s196 = scalar_select %p195, %s19, 1
        %s197 = smul.addr %s196, 8
        %s198 = scalar_lea.vmem %s0, %s197
        %p199 = pneg %p40
        %p200 = pneg %p37
        %p201 = pneg %p61
        %p202 = pneg %p58
        %p203 = pneg %p82
        %p204 = pneg %p79
        %p205 = pneg %p103
        %p206 = pneg %p100
        %p207 = pneg %p124
        %p208 = pneg %p121
        %p209 = pneg %p150
        %p210 = pneg %p147
        %s211 = sand.u32 %s137, 1
        %s212 = scalar_lea.sflag [#allocation3], %s211
        %s213 = sand.u32 %s137, 1
        %s214 = smul.addr %s213, 8
        %s215 = scalar_lea.vmem [#allocation2], %s214
        %p216 = scmp.lt.s32.totalorder %s19, 1
        %s217 = scalar_select %p216, %s19, 1
        %s218 = smul.addr %s217, 8
        %s219 = scalar_lea.vmem %s0, %s218
        %v220 = vld [vmem:[%s219] sm:$0xff]
        %v221 = vld [vmem:[%s1] sm:$0xff]
        %v222 = vld [vmem:[%s1 + $0x8] sm:$0xff]
        %v223 = vld [vmem:[%s1 + $0x10] sm:$0xff]
        %v224 = vld [vmem:[%s1 + $0x18] sm:$0xff]
        %v225 = vld [vmem:[%s2] sm:$0x1]
        %v227 = vlaneseq
        %v228 = vshrl.u32 %v227, 7
        %v229 = vsub.s32 0, %v228
        %v230 = vrot.slane %v225, %v229
        %vm232 = vcmask 261120
        %v234 = vsel %vm232, %v220, 0
        %236 = vmatprep.subr.mxu0 0.0
        %237 = vmatpush1.msra.mxu0 %v221
        %238 = vmatprep.subr.mxu0 0.0
        %239 = vmatpush1.msra.mxu0 %v222
        %240 = vmatprep.subr.mxu0 0.0
        %241 = vmatpush1.msra.mxu0 %v223
        %242 = vmatprep.subr.mxu0 0.0
        %243 = vmatpush1.msra.mxu0 %v224
        %244 = vmatprep.subr.mxu0 0.0
        %245 = vmatpush1.msra.mxu0 0.0
        %246 = vmatprep.subr.mxu0 0.0
        %247 = vmatpush1.msra.mxu0 0.0
        %248 = vmatprep.subr.mxu0 0.0
        %249 = vmatpush1.msra.mxu0 0.0
        %250 = vmatprep.subr.mxu0 0.0
        %251 = vmatpush1.msra.mxu0 0.0
        %252 = vmatprep.subr.mxu0 0.0
        %253 = vmatpush1.msra.mxu0 0.0
        %254 = vmatprep.subr.mxu0 0.0
        %255 = vmatpush1.msra.mxu0 0.0
        %256 = vmatprep.subr.mxu0 0.0
        %257 = vmatpush1.msra.mxu0 0.0
        %258 = vmatprep.subr.mxu0 0.0
        %259 = vmatpush1.msra.mxu0 0.0
        %260 = vmatprep.subr.mxu0 0.0
        %261 = vmatpush1.msra.mxu0 0.0
        %262 = vmatprep.subr.mxu0 0.0
        %263 = vmatpush1.msra.mxu0 0.0
        %264 = vmatprep.subr.mxu0 0.0
        %265 = vmatpush1.msra.mxu0 0.0
        %266 = vmatprep.subr.mxu0 0.0
        %267 = vmatpush1.msra.mxu0 0.0
        %268 = vmatprep.subr.mxu0 0.0
        %269 = vmatpush1.msra.mxu0 0.0
        %270 = vmatprep.subr.mxu0 0.0
        %271 = vmatpush1.msra.mxu0 0.0
        %272 = vmatprep.subr.mxu0 0.0
        %273 = vmatpush1.msra.mxu0 0.0
        %274 = vmatprep.subr.mxu0 0.0
        %275 = vmatpush1.msra.mxu0 0.0
        %276 = vmatprep.subr.mxu0 0.0
        %277 = vmatpush1.msra.mxu0 0.0
        %278 = vmatprep.subr.mxu0 0.0
        %279 = vmatpush1.msra.mxu0 0.0
        %280 = vmatprep.subr.mxu0 0.0
        %281 = vmatpush1.msra.mxu0 0.0
        %282 = vmatprep.subr.mxu0 0.0
        %283 = vmatpush1.msra.mxu0 0.0
        %284 = vmatprep.subr.mxu0 0.0
        %285 = vmatpush1.msra.mxu0 0.0
        %286 = vmatprep.subr.mxu0 0.0
        %287 = vmatpush1.msra.mxu0 0.0
        %288 = vmatprep.subr.mxu0 0.0
        %289 = vmatpush1.msra.mxu0 0.0
        %290 = vmatprep.subr.mxu0 0.0
        %291 = vmatpush1.msra.mxu0 0.0
        %292 = vmatprep.subr.mxu0 0.0
        %293 = vmatpush1.msra.mxu0 0.0
        %294 = vmatprep.subr.mxu0 0.0
        %295 = vmatpush1.msra.mxu0 0.0
        %296 = vmatprep.subr.mxu0 0.0
        %297 = vmatpush1.msra.mxu0 0.0
        %298 = vmatprep.subr.mxu0 0.0
        %299 = vmatpush1.msra.mxu0 0.0
        %300 = vmatprep.mubr.f32.mxu0 0.0
        %301 = vmatmul.mubr.f32.gmra.mrb[0].mxu0 %v234
        %v302 = vpop.f32.mrb[0].mxu0
        %v303 = vadd.f32 %v230, %v302
        %v304 = vpop.f32.mrb[0].mxu0
        %305 = vdwg.mxu0
        %v306 = vmul.f32 %v303, 0.70710677
        %v307 = verf.f32.pop %v306
        %v308 = vadd.f32 %v307, 1.0
        %v309 = vmul.f32 %v308, 0.5
        %v310 = vmul.f32 %v303, %v309
        %v311 = vld [vmem:[%s3] sm:$0xff]
        %v312 = vld [vmem:[%s3 + $0x8] sm:$0xff]
        %v313 = vld [vmem:[%s3 + $0x10] sm:$0xff]
        %v314 = vld [vmem:[%s3 + $0x18] sm:$0xff]
        %v315 = vld [vmem:[%s3 + $0x20] sm:$0xff]
        %v316 = vld [vmem:[%s3 + $0x28] sm:$0xff]
        %v317 = vld [vmem:[%s3 + $0x30] sm:$0xff]
        %v318 = vld [vmem:[%s3 + $0x38] sm:$0xff]
        %v319 = vld [vmem:[%s4] sm:$0x1]
        %v321 = vlaneseq
        %v322 = vshrl.u32 %v321, 7
        %v323 = vsub.s32 0, %v322
        %v324 = vrot.slane %v319, %v323
        %vm326 = vcmask 523264
        %v328 = vsel %vm326, %v310, 0
        %330 = vmatprep.subr.mxu0 0.0
        %331 = vmatpush1.msra.mxu0 %v311
        %332 = vmatprep.subr.mxu0 0.0
        %333 = vmatpush1.msra.mxu0 %v312
        %334 = vmatprep.subr.mxu0 0.0
        %335 = vmatpush1.msra.mxu0 %v313
        %336 = vmatprep.subr.mxu0 0.0
        %337 = vmatpush1.msra.mxu0 %v314
        %338 = vmatprep.subr.mxu0 0.0
        %339 = vmatpush1.msra.mxu0 %v315
        %340 = vmatprep.subr.mxu0 0.0
        %341 = vmatpush1.msra.mxu0 %v316
        %342 = vmatprep.subr.mxu0 0.0
        %343 = vmatpush1.msra.mxu0 %v317
        %344 = vmatprep.subr.mxu0 0.0
        %345 = vmatpush1.msra.mxu0 %v318
        %346 = vmatprep.subr.mxu0 0.0
        %347 = vmatpush1.msra.mxu0 0.0
        %348 = vmatprep.subr.mxu0 0.0
        %349 = vmatpush1.msra.mxu0 0.0
        %350 = vmatprep.subr.mxu0 0.0
        %351 = vmatpush1.msra.mxu0 0.0
        %352 = vmatprep.subr.mxu0 0.0
        %353 = vmatpush1.msra.mxu0 0.0
        %354 = vmatprep.subr.mxu0 0.0
        %355 = vmatpush1.msra.mxu0 0.0
        %356 = vmatprep.subr.mxu0 0.0
        %357 = vmatpush1.msra.mxu0 0.0
        %358 = vmatprep.subr.mxu0 0.0
        %359 = vmatpush1.msra.mxu0 0.0
        %360 = vmatprep.subr.mxu0 0.0
        %361 = vmatpush1.msra.mxu0 0.0
        %362 = vmatprep.subr.mxu0 0.0
        %363 = vmatpush1.msra.mxu0 0.0
        %364 = vmatprep.subr.mxu0 0.0
        %365 = vmatpush1.msra.mxu0 0.0
        %366 = vmatprep.subr.mxu0 0.0
        %367 = vmatpush1.msra.mxu0 0.0
        %368 = vmatprep.subr.mxu0 0.0
        %369 = vmatpush1.msra.mxu0 0.0
        %370 = vmatprep.subr.mxu0 0.0
        %371 = vmatpush1.msra.mxu0 0.0
        %372 = vmatprep.subr.mxu0 0.0
        %373 = vmatpush1.msra.mxu0 0.0
        %374 = vmatprep.subr.mxu0 0.0
        %375 = vmatpush1.msra.mxu0 0.0
        %376 = vmatprep.subr.mxu0 0.0
        %377 = vmatpush1.msra.mxu0 0.0
        %378 = vmatprep.subr.mxu0 0.0
        %379 = vmatpush1.msra.mxu0 0.0
        %380 = vmatprep.subr.mxu0 0.0
        %381 = vmatpush1.msra.mxu0 0.0
        %382 = vmatprep.subr.mxu0 0.0
        %383 = vmatpush1.msra.mxu0 0.0
        %384 = vmatprep.subr.mxu0 0.0
        %385 = vmatpush1.msra.mxu0 0.0
        %386 = vmatprep.subr.mxu0 0.0
        %387 = vmatpush1.msra.mxu0 0.0
        %388 = vmatprep.subr.mxu0 0.0
        %389 = vmatpush1.msra.mxu0 0.0
        %390 = vmatprep.subr.mxu0 0.0
        %391 = vmatpush1.msra.mxu0 0.0
        %392 = vmatprep.subr.mxu0 0.0
        %393 = vmatpush1.msra.mxu0 0.0
        %394 = vmatprep.mubr.f32.mxu0 0.0
        %395 = vmatmul.mubr.f32.gmra.mrb[0].mxu0 %v328
        %v396 = vpop.f32.mrb[0].mxu0
        %v397 = vadd.f32 %v324, %v396
        %v398 = vpop.f32.mrb[0].mxu0
        %399 = vdwg.mxu0
        %400 = vst.msk [vmem:[%s215] sm:$0xff] %vm232, %v397
        %s401 = sand.u32 %s137, 1
        %s402 = scalar_lea.sflag [#allocation3], %s401
        %s403 = sand.u32 %s137, 1
        %s404 = smul.addr %s403, 8
        %s405 = scalar_lea.vmem [#allocation2], %s404
        // Predicated region
        $region41: #{tpu_custom_call.1} parent=39 // pred_check
          %p406 = pneg %p147
        $region42: #{tpu_custom_call.1} parent=39 // pred_check_branch
          %408 = sbr.rel (%p406) target = $region44
        $region43: #{tpu_custom_call.1} parent=39 // pred_region
          %s410 = ssub.s32 128, 128
          %411 = vsyncadd %s402, %s410
          %s412 = smul.addr %s19, 128
          %s413 = scalar_lea.hbm %s5, %s412
          %s415 = sshll.u32 %s405, 4
          %s416 = int_to_ptr.vmem [resolvable:$true] %s415
          %418 = dma.vmem_to_hbm [thread:$0]  %s416, 128, %s413, %s402
        $region44: #{tpu_custom_call.1} parent=39 // pred_fallthru
          _
      $region40: #{tpu_custom_call.1} parent=5 // pred_fallthru
        _
      %p419 = scmp.le.s32.totalorder 2, %s14
      // Predicated region
      $region45: #{tpu_custom_call.1} parent=5 // pred_check
        %p420 = pneg %p419
      $region46: #{tpu_custom_call.1} parent=5 // pred_check_branch
        %422 = sbr.rel (%p420) target = $region48
      $region47: #{tpu_custom_call.1} parent=5 // pred_region
        %s423 = ssub.s32 %s14, 2
        // Predicated region
        $region49: #{tpu_custom_call.1} parent=47 // pred_check
          %p424 = pneg %p153
        $region50: #{tpu_custom_call.1} parent=47 // pred_check_branch
          %426 = sbr.rel (%p424) target = $region52
        $region51: #{tpu_custom_call.1} parent=47 // pred_region
          %s427 = sand.u32 %s138, 1
          %s428 = scalar_lea.sflag [#allocation3], %s427
          %s429 = sand.u32 %s138, 1
          %s430 = smul.addr %s429, 8
          %s431 = scalar_lea.vmem [#allocation2], %s430
          %432 = dma.done %s428, 128
        $region52: #{tpu_custom_call.1} parent=47 // pred_fallthru
          _
      $region48: #{tpu_custom_call.1} parent=5 // pred_fallthru
        _
    $region6: #{tpu_custom_call.1} parent=1 // loop_footer
      %s18 = sadd.s32 1, %s14
    $region7: #{tpu_custom_call.1} parent=1 // loop_footer_branch
      %13 = sbr.rel target = $region3
    $region8: #{tpu_custom_call.1} parent=1 // loop_exit
      _
    %433 = vsyncpa [#allocation3], 1
    %s434 = scalar_lea.sflag [#allocation3], 1
    %435 = vsyncpa %s434, 1

</llo_original>
